<compile_context>
chip_gen: v6e
topology: v6e:2x2x1
jax: 0.10.0
libtpu: 0.0.40
codegen_flags: <defaults>
</compile_context>

<pallas_src>
import functools

import jax
import jax.numpy as jnp
import numpy as np
from jax.experimental import pallas as pl
from jax.experimental.pallas import tpu as pltpu


# ---------------------------------------------------------------------------
# Kernel 1: per-batch seed mask -> separable dilation -> keep mask (no scale).
# ---------------------------------------------------------------------------
def _dropblock_mask_kernel(gamma_ref, rnd_ref, keep_ref, pad_ref, *, block_size):
    _, _, H, W = rnd_ref.shape          # block is (1, 1, H, W)
    p = block_size // 2
    gamma = gamma_ref[0]                # runtime scalar from SMEM

    # Bernoulli "seed" mask for this batch element.
    m = (rnd_ref[...] < gamma).astype(jnp.float32)

    # Zero-padded scratch for the stride-1 max pool.  Zero padding is only
    # equivalent to F.max_pool2d's implicit -inf padding because the mask
    # values are restricted to {0, 1}.
    pad_ref[...] = jnp.zeros_like(pad_ref)
    pad_ref[:, :, p:p + H, p:p + W] = m

    # Separable max pool (kernel=block_size, stride=1, padding=block_size//2):
    # block_size row-shifted maxes, then block_size column-shifted maxes
    # (2*bs passes instead of bs^2).
    rowmax = pad_ref[:, :, 0:H, :]                      # (1,1,H,W+2p)
    for di in range(1, block_size):
        rowmax = jnp.maximum(rowmax, pad_ref[:, :, di:di + H, :])
    pooled = rowmax[:, :, :, 0:W]                       # (1,1,H,W)
    for dj in range(1, block_size):
        pooled = jnp.maximum(pooled, rowmax[:, :, :, dj:dj + W])

    keep_ref[...] = 1.0 - pooled        # values in {0, 1}; scale folded in glue


# ---------------------------------------------------------------------------
# Kernel 2: tiled, lane-dense elementwise apply (the HBM-bound bulk).
# ---------------------------------------------------------------------------
def _dropblock_apply_kernel(x_ref, keep_ref, o_ref):
    # keep block is (b_tile, 1, hw_tile) and broadcasts over the channel axis.
    keep = keep_ref[...].astype(x_ref.dtype)            # no-op if pre-cast
    o_ref[...] = (x_ref[...] * keep).astype(o_ref.dtype)


def _pick_tiles(B, C, HW, itemsize, budget_bytes=4 * 1024 * 1024):
    """Pick (b_tile, c_tile, hw_tile) for the apply kernel.

    Budget-filling x-blocks (~4 MiB) so double-buffered in+out tiles stay well
    under the scoped VMEM limit on every generation (v5e 16 MiB default
    overridden below, v7x 64 MiB physical), while avoiding many tiny blocks
    (per-grid-step overhead ~0.35 us dominates small feature maps).
    Constraints: last two block dims (c_tile, hw_tile) must be multiples of
    (8, 128) or equal the full array dims.
    """
    row_bytes = HW * itemsize
    if C * row_bytes <= budget_bytes:
        # Whole channel axis per block; also tile the batch axis so small
        # feature maps (late-CNN 7x7 / 14x14 layers) get big blocks.
        c_tile, hw_tile = C, HW
        b_tile = int(max(1, min(B, budget_bytes // max(1, C * row_bytes))))
    elif 8 * row_bytes <= budget_bytes:
        # Tile channels in multiples of 8.
        b_tile, hw_tile = 1, HW
        c_tile = int(min(C, (budget_bytes // row_bytes) // 8 * 8))
    else:
        # Very large feature maps (e.g. 512x512 f32 = 1 MiB/channel): tile the
        # lane (HW) axis in multiples of 128 instead of emitting 8 MiB blocks.
        b_tile = 1
        c_tile = 8 if C >= 8 else C
        hw_tile = int(max(128, (budget_bytes // (c_tile * itemsize)) // 128 * 128))
    return b_tile, c_tile, hw_tile


def _ensure_parallelism(B, C, HW, b_tile, c_tile, hw_tile):
    """Make sure the apply grid has >=2 blocks so v7x's two TensorCores both
    get work.  No-op when there already are >=2 blocks or the problem is too
    small to split along a legal tile boundary."""
    n_blocks = pl.cdiv(B, b_tile) * pl.cdiv(HW, hw_tile) * pl.cdiv(C, c_tile)
    if n_blocks >= 2:
        return b_tile, c_tile, hw_tile
    if B >= 2:
        return max(1, B // 2), c_tile, hw_tile
    if C >= 16:
        return b_tile, max(8, (C // 2) // 8 * 8), hw_tile
    if HW >= 256:
        return b_tile, c_tile, max(128, (HW // 2) // 128 * 128)
    return b_tile, c_tile, hw_tile


def dropblock_pallas(x, rnd, gamma, block_size):
    """x: (B, C, H, W); rnd: (B, 1, H, W) uniform [0,1); gamma: scalar."""
    B, C, H, W = x.shape
    if block_size % 2 != 1:
        # Matches the PyTorch module's intended use (default 3); even sizes
        # would need ceil_mode + output-crop semantics.
        raise ValueError("DropBlock2D Pallas kernel supports odd block_size only")
    HW = H * W
    p = block_size // 2
    gamma_arr = jnp.reshape(jnp.asarray(gamma, dtype=jnp.float32), (1,))

    # --- 1. keep-mask, gridded over B so VMEM use is bounded per step -------
    keep = pl.pallas_call(
        functools.partial(_dropblock_mask_kernel, block_size=int(block_size)),
        out_shape=jax.ShapeDtypeStruct((B, 1, H, W), jnp.float32),
        grid=(B,),
        in_specs=[
            pl.BlockSpec(memory_space=pltpu.MemorySpace.SMEM),       # gamma (1,)
            pl.BlockSpec((1, 1, H, W), lambda b: (b, 0, 0, 0)),      # rnd
        ],
        out_specs=pl.BlockSpec((1, 1, H, W), lambda b: (b, 0, 0, 0)),
        scratch_shapes=[
            pltpu.VMEM((1, 1, H + 2 * p, W + 2 * p), jnp.float32),
        ],
        compiler_params=pltpu.CompilerParams(
            dimension_semantics=("parallel",),
            vmem_limit_bytes=32 * 1024 * 1024,
        ),
    )(gamma_arr, rnd)

    # --- 2. global renormalization in plain JAX glue (tiny: O(B*H*W)) -------
    # Fold mask.numel()/(mask.sum()+1e-6) into keep once, so the apply kernel
    # does ONE multiply per element.  Scale is computed in f32; the final cast
    # to x.dtype is exact for f32 inputs (tiny systematic deviation for bf16).
    scale = keep.size / (jnp.sum(keep) + 1e-6)
    keep2 = (keep * scale).reshape(B, 1, HW).astype(x.dtype)

    # --- 3. lane-dense, budget-filling tiled apply ---------------------------
    x2 = x.reshape(B, C, HW)            # row-major reshapes: zero cost
    b_tile, c_tile, hw_tile = _pick_tiles(B, C, HW, x.dtype.itemsize)
    b_tile, c_tile, hw_tile = _ensure_parallelism(B, C, HW, b_tile, c_tile, hw_tile)
    # Grid order (b, hw, c): c innermost so the small keep block (index map
    # independent of c) stays resident and is not re-DMAed across channels.
    grid = (pl.cdiv(B, b_tile), pl.cdiv(HW, hw_tile), pl.cdiv(C, c_tile))

    out = pl.pallas_call(
        _dropblock_apply_kernel,
        out_shape=jax.ShapeDtypeStruct((B, C, HW), x.dtype),
        grid=grid,
        in_specs=[
            pl.BlockSpec((b_tile, c_tile, hw_tile), lambda b, h, c: (b, c, h)),
            pl.BlockSpec((b_tile, 1, hw_tile), lambda b, h, c: (b, 0, h)),
        ],
        out_specs=pl.BlockSpec((b_tile, c_tile, hw_tile), lambda b, h, c: (b, c, h)),
        compiler_params=pltpu.CompilerParams(
            dimension_semantics=("parallel", "parallel", "parallel"),
            # ~4 MiB x-blocks double-buffered for in+out -> ~16-17 MiB peak;
            # 48 MiB is safe on every generation (v7x physical VMEM is 64 MiB).
            vmem_limit_bytes=48 * 1024 * 1024,
        ),
    )(x2, keep2)
    return out.reshape(B, C, H, W)


class DropBlock2D:
    """JAX/Pallas port of the PyTorch DropBlock2D module (no learned params)."""

    def __init__(self, block_size=3, drop_prob=0.1, start_epoch=3,
                 max_epoch=12, progressive=True):
        self.block_size = block_size
        self.initial_drop_prob = drop_prob
        self.drop_prob = drop_prob
        self.start_epoch = start_epoch
        self.max_epoch = max_epoch
        self.progressive = progressive
        self.current_epoch = 0
        self.training = True

    def set_epoch(self, epoch):
        self.current_epoch = epoch

    def __call__(self, x, key):
        if not self.training:
            return x
        if self.current_epoch < self.start_epoch:
            return x
        if self.progressive:
            progress = min(
                1.0,
                (self.current_epoch - self.start_epoch)
                / max(1, self.max_epoch - self.start_epoch),
            )
            drop_prob = self.initial_drop_prob * progress
        else:
            drop_prob = self.initial_drop_prob
        gamma = drop_prob / self.block_size ** 2

        B, C, H, W = x.shape
        # torch.rand equivalent (uniform [0, 1)); RNG stays in plain JAX glue
        # so results are exactly verifiable against the jax.random reference.
        rnd = jax.random.uniform(key, (B, 1, H, W), dtype=jnp.float32)
        return dropblock_pallas(x, rnd, gamma, self.block_size)


def _reference(x, rnd, gamma, block_size):
    """Pure-JAX reference mirroring the PyTorch forward (for verification)."""
    p = block_size // 2
    m = (rnd < gamma).astype(jnp.float32)
    pooled = jax.lax.reduce_window(
        m, -jnp.inf, jax.lax.max,
        window_dimensions=(1, 1, block_size, block_size),
        window_strides=(1, 1, 1, 1),
        padding=[(0, 0), (0, 0), (p, p), (p, p)],
    )
    keep = 1.0 - pooled
    return x * keep * (keep.size / (keep.sum() + 1e-6))


if __name__ == "__main__":
    key = jax.random.PRNGKey(0)
    kx, kr = jax.random.split(key)

    B, C, H, W = 2, 4, 16, 16
    x = jax.random.normal(kx, (B, C, H, W), dtype=jnp.float32)

    db = DropBlock2D(block_size=3, drop_prob=0.1, start_epoch=3,
                     max_epoch=12, progressive=True)
    db.set_epoch(10)  # past start_epoch so the drop path is exercised

    out = jax.block_until_ready(db(x, kr))

    # Verify against the plain-JAX reference of the same math.
    progress = min(1.0, (10 - 3) / max(1, 12 - 3))
    gamma = (0.1 * progress) / 3 ** 2
    rnd = jax.random.uniform(kr, (B, 1, H, W), dtype=jnp.float32)
    ref = _reference(x, rnd, jnp.float32(gamma), 3)
    np.testing.assert_allclose(np.asarray(out), np.asarray(ref),
                               rtol=1e-5, atol=1e-5)

    print("KERNEL_OK")
</pallas_src>

<mosaic_0001>
module attributes {stable_mosaic.version = 11 : i64} {
  func.func @_dropblock_mask_kernel(%arg0: i32, %arg1: memref<1xf32, #tpu.memory_space<smem>>, %arg2: memref<1x1x16x16xf32, #tpu.memory_space<vmem>>, %arg3: memref<1x1x16x16xf32, #tpu.memory_space<vmem>>, %arg4: memref<1x1x18x18xf32, #tpu.memory_space<vmem>>) attributes {dimension_semantics = [#tpu.dimension_semantics<parallel>], iteration_bounds = array<i64: 2>, scalar_prefetch = 0 : i64, scratch_operands = 1 : i64, tpu.core_type = #tpu.core_type<tc>, window_params = [{transform_indices = @transform_0, window_bounds = array<i64: 1>}, {transform_indices = @transform_1, window_bounds = array<i64: 1, 1, 16, 16>}, {transform_indices = @transform_2, window_bounds = array<i64: 1, 1, 16, 16>}]} {
    %c0 = arith.constant 0 : index
    %0 = memref.load %arg1[%c0] : memref<1xf32, #tpu.memory_space<smem>>
    %c0_0 = arith.constant 0 : index
    %c0_1 = arith.constant 0 : index
    %c0_2 = arith.constant 0 : index
    %c0_3 = arith.constant 0 : index
    %1 = vector.load %arg2[%c0_0, %c0_1, %c0_2, %c0_3] : memref<1x1x16x16xf32, #tpu.memory_space<vmem>>, vector<1x1x16x16xf32>
    %2 = vector.broadcast %0 : f32 to vector<1x1x16x16xf32>
    %3 = arith.cmpf olt, %1, %2 : vector<1x1x16x16xf32>
    %4 = arith.extui %3 : vector<1x1x16x16xi1> to vector<1x1x16x16xi32>
    %5 = arith.sitofp %4 : vector<1x1x16x16xi32> to vector<1x1x16x16xf32>
    %cst = arith.constant 0.000000e+00 : f32
    %6 = vector.broadcast %cst : f32 to vector<1x1x18x18xf32>
    %c0_4 = arith.constant 0 : index
    %c0_5 = arith.constant 0 : index
    %c0_6 = arith.constant 0 : index
    %c0_7 = arith.constant 0 : index
    %7 = vector.load %arg4[%c0_4, %c0_5, %c0_6, %c0_7] : memref<1x1x18x18xf32, #tpu.memory_space<vmem>>, vector<1x1x18x18xf32>
    tpu.vector_store %arg4[%c0_4, %c0_5, %c0_6, %c0_7], %6 {strides = array<i32>} : memref<1x1x18x18xf32, #tpu.memory_space<vmem>>, vector<1x1x18x18xf32>,
    %c0_8 = arith.constant 0 : index
    %c0_9 = arith.constant 0 : index
    %c1 = arith.constant 1 : index
    %c1_10 = arith.constant 1 : index
    %8 = vector.load %arg4[%c0_8, %c0_9, %c1, %c1_10] : memref<1x1x18x18xf32, #tpu.memory_space<vmem>>, vector<1x1x16x16xf32>
    tpu.vector_store %arg4[%c0_8, %c0_9, %c1, %c1_10], %5 {strides = array<i32>} : memref<1x1x18x18xf32, #tpu.memory_space<vmem>>, vector<1x1x16x16xf32>,
    %c0_11 = arith.constant 0 : index
    %c0_12 = arith.constant 0 : index
    %c0_13 = arith.constant 0 : index
    %c0_14 = arith.constant 0 : index
    %9 = vector.load %arg4[%c0_11, %c0_12, %c0_13, %c0_14] : memref<1x1x18x18xf32, #tpu.memory_space<vmem>>, vector<1x1x16x18xf32>
    %c0_15 = arith.constant 0 : index
    %c0_16 = arith.constant 0 : index
    %c1_17 = arith.constant 1 : index
    %c0_18 = arith.constant 0 : index
    %10 = vector.load %arg4[%c0_15, %c0_16, %c1_17, %c0_18] : memref<1x1x18x18xf32, #tpu.memory_space<vmem>>, vector<1x1x16x18xf32>
    %11 = arith.maximumf %9, %10 : vector<1x1x16x18xf32>
    %c0_19 = arith.constant 0 : index
    %c0_20 = arith.constant 0 : index
    %c2 = arith.constant 2 : index
    %c0_21 = arith.constant 0 : index
    %12 = vector.load %arg4[%c0_19, %c0_20, %c2, %c0_21] : memref<1x1x18x18xf32, #tpu.memory_space<vmem>>, vector<1x1x16x18xf32>
    %13 = arith.maximumf %11, %12 : vector<1x1x16x18xf32>
    %14 = vector.extract_strided_slice %13 {offsets = [0, 0, 0, 0], sizes = [1, 1, 16, 16], strides = [1, 1, 1, 1]} : vector<1x1x16x18xf32> to vector<1x1x16x16xf32>
    %15 = vector.extract_strided_slice %13 {offsets = [0, 0, 0, 1], sizes = [1, 1, 16, 16], strides = [1, 1, 1, 1]} : vector<1x1x16x18xf32> to vector<1x1x16x16xf32>
    %16 = arith.maximumf %14, %15 : vector<1x1x16x16xf32>
    %17 = vector.extract_strided_slice %13 {offsets = [0, 0, 0, 2], sizes = [1, 1, 16, 16], strides = [1, 1, 1, 1]} : vector<1x1x16x18xf32> to vector<1x1x16x16xf32>
    %18 = arith.maximumf %16, %17 : vector<1x1x16x16xf32>
    %cst_22 = arith.constant 1.000000e+00 : f32
    %19 = vector.broadcast %cst_22 : f32 to vector<1x1x16x16xf32>
    %20 = arith.subf %19, %18 : vector<1x1x16x16xf32>
    %c0_23 = arith.constant 0 : index
    %c0_24 = arith.constant 0 : index
    %c0_25 = arith.constant 0 : index
    %c0_26 = arith.constant 0 : index
    %21 = vector.load %arg3[%c0_23, %c0_24, %c0_25, %c0_26] : memref<1x1x16x16xf32, #tpu.memory_space<vmem>>, vector<1x1x16x16xf32>
    tpu.vector_store %arg3[%c0_23, %c0_24, %c0_25, %c0_26], %20 {strides = array<i32>} : memref<1x1x16x16xf32, #tpu.memory_space<vmem>>, vector<1x1x16x16xf32>,
    return
  }
  func.func @transform_0(%arg0: i32) -> i32 {
    %c0_i32 = arith.constant 0 : i32
    %c0_i32_0 = arith.constant 0 : i32
    return %c0_i32 : i32
  }
  func.func @transform_1(%arg0: i32) -> (i32, i32, i32, i32) {
    %c0_i32 = arith.constant 0 : i32
    %c0_i32_0 = arith.constant 0 : i32
    %c0_i32_1 = arith.constant 0 : i32
    %c0_i32_2 = arith.constant 0 : i32
    return %arg0, %c0_i32, %c0_i32_0, %c0_i32_1 : i32, i32, i32, i32
  }
  func.func @transform_2(%arg0: i32) -> (i32, i32, i32, i32) {
    %c0_i32 = arith.constant 0 : i32
    %c0_i32_0 = arith.constant 0 : i32
    %c0_i32_1 = arith.constant 0 : i32
    %c0_i32_2 = arith.constant 0 : i32
    return %arg0, %c0_i32, %c0_i32_0, %c0_i32_1 : i32, i32, i32, i32
  }
}

</mosaic_0001>

<llo_original>
// kernel: tpu_custom_call.1
$region0: #{tpu_custom_call.1}
  #allocation0 [shape = 'u32[]', space=smem, size = 0x4, offset = 0x4, fixed_abs, tag = 'smem constant byte address 0x4 - core index']
  #allocation1 [shape = 'u32[144,128]{1,0:T(1,128)}', space=vmem, size = 0x12000, scoped, tag = 'internal scratch']
  #allocation2 [shape = 'f32[1,1,18,18]{3,2,1,0:T(8,128)}', space=vmem, size = 0x3000, scoped, tag = 'scratch operand']
  #allocation3 [shape = 'f32[1]{0:T(128)S(6)}', space=smem, size = 0x200, scoped, tag = 'scoped memory for tpu_custom_call.1']
  %s0 = inlined_call_operand.<no memory space> [shape: f32[1], index: 0, kind: input, shape index: {}]
  %s1 = inlined_call_operand.hbm [shape: f32[2,1,16,16], index: 1, kind: input, shape index: {}]
  %s2 = inlined_call_operand.hbm [shape: f32[2,1,16,16], index: 2, kind: output, shape index: {}]
  %s3 = sld [smem:[#allocation0]]
  $region45: #{tpu_custom_call.1} parent=0
    _
  %s5 = ssub.s32 1, %s3
  %s6 = scalar_select 0, %s5, %s3
  %7 = sst [smem:[#allocation3]] %s0
  $region1: #{tpu_custom_call.1} parent=0
    #allocation4 [shape = 'u8[16384]{0}', space=vmem, size = 0x4000, scoped, tag = 'input window, operand 1']
    #allocation5 [shape = 's32[2]{0}', space=sflag, size = 0x8, scoped, tag = 'scoped memory for tpu_custom_call.1']
    #allocation6 [shape = 's32[2]{0}', space=sflag, size = 0x8, scoped, tag = 'scoped memory for tpu_custom_call.1']
    #allocation7 [shape = 'u8[16384]{0}', space=vmem, size = 0x4000, scoped, tag = 'output window, operand 0']
    %8 = vsyncpa [#allocation5], 0
    %s9 = scalar_lea.sflag [#allocation5], 1
    %10 = vsyncpa %s9, 0
    %11 = vsyncpa [#allocation6], 0
    %s12 = scalar_lea.sflag [#allocation6], 1
    %13 = vsyncpa %s12, 0
    loop: start=0, step=1, limit=4
    $region2: #{tpu_custom_call.1} parent=1 // loop_pre_header
      _
    $region3: #{tpu_custom_call.1} parent=1 // loop_header
      %s15 = sphi 0, %s19
      %p16 = scmp.ge.s32.totalorder %s15, 4
      %s23 = sphi 0, %s23
      %s25 = sphi 0, %s23
      %s26 = sphi 0, %s25
      %s40 = sphi 0, %s26
      %s46 = sphi 0, %s48
      %s49 = sphi 0, %s46
      %s50 = sphi 0, %s49
      %s66 = sphi 0, %s50
      %s72 = sphi 0, %s74
      %s75 = sphi 0, %s72
      %s76 = sphi 0, %s75
      %s92 = sphi 0, %s76
    $region4: #{tpu_custom_call.1} parent=1 // loop_header_branch
      %18 = sbr.rel (%p16) target = $region8
    $region5: #{tpu_custom_call.1} parent=1 // loop_body
      %s20 = ssub.s32 %s15, 1
      %s21 = ssub.s32 %s15, 2
      %s22 = sadd.s32 %s15, 1
      %s24 = sadd.s32 %s23, 1
      %p27 = scmp.eq.s32.totalorder %s15, 1
      %p28 = scmp.ne.s32.totalorder %s23, %s25
      %p29 = scmp.eq.s32.totalorder %s15, 0
      %p30 = por %p28, %p29
      %p31 = scmp.ne.s32.totalorder %s23, %s25
      %p32 = scmp.eq.s32.totalorder %s20, 1
      %p33 = por %p31, %p32
      %p34 = scmp.ne.s32.totalorder %s25, %s26
      %p35 = scmp.eq.s32.totalorder %s20, 0
      %p36 = por %p34, %p35
      %p37 = scmp.ne.s32.totalorder %s25, %s26
      %p38 = scmp.eq.s32.totalorder %s21, 1
      %p39 = por %p37, %p38
      %p41 = scmp.ne.s32.totalorder %s26, %s40
      %p42 = scmp.eq.s32.totalorder %s21, 0
      %p43 = por %p41, %p42
      %s44 = ssub.s32 %s15, %s22
      %p45 = scmp.eq.s32.totalorder %s44, 0
      %s47 = sadd.s32 %s46, 1
      %s48 = scalar_select %p45, %s46, %s47
      %p51 = pneg %p45
      %p52 = scmp.eq.s32.totalorder %s15, 1
      %p53 = por %p51, %p52
      %p54 = scmp.ne.s32.totalorder %s46, %s49
      %p55 = scmp.eq.s32.totalorder %s15, 0
      %p56 = por %p54, %p55
      %p57 = scmp.ne.s32.totalorder %s46, %s49
      %p58 = scmp.eq.s32.totalorder %s20, 1
      %p59 = por %p57, %p58
      %p60 = scmp.ne.s32.totalorder %s49, %s50
      %p61 = scmp.eq.s32.totalorder %s20, 0
      %p62 = por %p60, %p61
      %p63 = scmp.ne.s32.totalorder %s49, %s50
      %p64 = scmp.eq.s32.totalorder %s21, 1
      %p65 = por %p63, %p64
      %p67 = scmp.ne.s32.totalorder %s50, %s66
      %p68 = scmp.eq.s32.totalorder %s21, 0
      %p69 = por %p67, %p68
      %s70 = ssub.s32 %s15, %s22
      %p71 = scmp.eq.s32.totalorder %s70, 0
      %s73 = sadd.s32 %s72, 1
      %s74 = scalar_select %p71, %s72, %s73
      %p77 = pneg %p71
      %p78 = scmp.eq.s32.totalorder %s15, 1
      %p79 = por %p77, %p78
      %p80 = scmp.ne.s32.totalorder %s72, %s75
      %p81 = scmp.eq.s32.totalorder %s15, 0
      %p82 = por %p80, %p81
      %p83 = scmp.ne.s32.totalorder %s72, %s75
      %p84 = scmp.eq.s32.totalorder %s20, 1
      %p85 = por %p83, %p84
      %p86 = scmp.ne.s32.totalorder %s75, %s76
      %p87 = scmp.eq.s32.totalorder %s20, 0
      %p88 = por %p86, %p87
      %p89 = scmp.ne.s32.totalorder %s75, %s76
      %p90 = scmp.eq.s32.totalorder %s21, 1
      %p91 = por %p89, %p90
      %p93 = scmp.ne.s32.totalorder %s76, %s92
      %p94 = scmp.eq.s32.totalorder %s21, 0
      %p95 = por %p93, %p94
      %p96 = scmp.le.s32.totalorder 1, %s15
      %p97 = scmp.lt.s32.totalorder %s15, 3
      %p98 = pnand %p96, %p97
      %p99 = pneg %p98
      // Predicated region
      $region9: #{tpu_custom_call.1} parent=5 // pred_check
        _
      $region10: #{tpu_custom_call.1} parent=5 // pred_check_branch
        %101 = sbr.rel (%p98) target = $region12
      $region11: #{tpu_custom_call.1} parent=5 // pred_region
        %s102 = ssub.s32 %s15, 1
        // Predicated region
        $region13: #{tpu_custom_call.1} parent=11 // pred_check
          %p103 = pneg %p36
        $region14: #{tpu_custom_call.1} parent=11 // pred_check_branch
          %105 = sbr.rel (%p103) target = $region16
        $region15: #{tpu_custom_call.1} parent=11 // pred_region
          _
        $region16: #{tpu_custom_call.1} parent=11 // pred_fallthru
          _
      $region12: #{tpu_custom_call.1} parent=5 // pred_fallthru
        _
      %p106 = scmp.lt.s32.totalorder %s15, 2
      // Predicated region
      $region17: #{tpu_custom_call.1} parent=5 // pred_check
        %p107 = pneg %p106
      $region18: #{tpu_custom_call.1} parent=5 // pred_check_branch
        %109 = sbr.rel (%p107) target = $region20
      $region19: #{tpu_custom_call.1} parent=5 // pred_region
        // Predicated region
        $region21: #{tpu_custom_call.1} parent=19 // pred_check
          %p110 = pneg %p56
        $region22: #{tpu_custom_call.1} parent=19 // pred_check_branch
          %112 = sbr.rel (%p110) target = $region24
        $region23: #{tpu_custom_call.1} parent=19 // pred_region
          %s113 = sand.u32 %s46, 1
          %s114 = scalar_lea.sflag [#allocation5], %s113
          %s115 = sand.u32 %s46, 1
          %s116 = smul.addr %s115, 16
          %s117 = scalar_lea.vmem [#allocation4], %s116
          %s119 = ssub.s32 256, 256
          %120 = vsyncadd %s114, %s119
          %s121 = smul.addr %s15, 2
          %s122 = smul.addr %s121, 128
          %s123 = scalar_lea.hbm %s1, %s122
          %s124 = sshll.u32 %s117, 4
          %s125 = int_to_ptr.vmem [resolvable:$true] %s124
          %130 = dma.hbm_to_vmem [thread:$0]  %s123, 256, %s125, %s114, 128, 128, 8
        $region24: #{tpu_custom_call.1} parent=19 // pred_fallthru
          _
      $region20: #{tpu_custom_call.1} parent=5 // pred_fallthru
        _
      %p131 = scmp.le.s32.totalorder 1, %s15
      %p132 = scmp.lt.s32.totalorder %s15, 3
      %p133 = pnand %p131, %p132
      %p134 = pneg %p133
      // Predicated region
      $region25: #{tpu_custom_call.1} parent=5 // pred_check
        _
      $region26: #{tpu_custom_call.1} parent=5 // pred_check_branch
        %136 = sbr.rel (%p133) target = $region28
      $region27: #{tpu_custom_call.1} parent=5 // pred_region
        %s137 = ssub.s32 %s15, 1
        %s138 = sand.u32 %s49, 1
        %s139 = scalar_lea.sflag [#allocation5], %s138
        %s140 = sand.u32 %s49, 1
        %s141 = smul.addr %s140, 16
        %s142 = scalar_lea.vmem [#allocation4], %s141
        // Predicated region
        $region29: #{tpu_custom_call.1} parent=27 // pred_check
          %p143 = pneg %p62
        $region30: #{tpu_custom_call.1} parent=27 // pred_check_branch
          %145 = sbr.rel (%p143) target = $region32
        $region31: #{tpu_custom_call.1} parent=27 // pred_region
          %146 = dma.done %s139, 256
        $region32: #{tpu_custom_call.1} parent=27 // pred_fallthru
          _
        %p147 = pneg %p36
        %p148 = pneg %p33
        %s149 = sand.u32 %s49, 1
        %s150 = scalar_lea.sflag [#allocation5], %s149
        %s151 = sand.u32 %s49, 1
        %s152 = smul.addr %s151, 16
        %s153 = scalar_lea.vmem [#allocation4], %s152
        %p154 = pneg %p62
        %p155 = pneg %p59
        %p156 = pneg %p88
        %p157 = pneg %p85
        %s158 = sand.u32 %s75, 1
        %s159 = scalar_lea.sflag [#allocation6], %s158
        %s160 = sand.u32 %s75, 1
        %s161 = smul.addr %s160, 16
        %s162 = scalar_lea.vmem [#allocation7], %s161
        %s163 = sld [smem:[#allocation3]]
        %v164 = vld [vmem:[%s142] sm:$0xff]
        %v165 = vld [vmem:[%s142 + $0x8] sm:$0xff]
        %v166 = vstv %s163
        %vm167 = vcmp.lt.f32.partialorder %v164, %v166
        %vm168 = vcmp.lt.f32.partialorder %v165, %v166
        %v169 = vsel %vm167, 1, 0
        %v170 = vsel %vm168, 1, 0
        %v171 = vcvt.s32.f32 %v169
        %v172 = vcvt.s32.f32 %v170
        %vm173 = vcmask 146432
        %174 = vst.msk [vmem:[#allocation2] sm:$0xff] %vm173, 0.0
        %175 = vst.msk [vmem:[#allocation2 + $0x8] sm:$0xff] %vm173, 0.0
        %vm176 = vcmask 140288
        %177 = vst.msk [vmem:[#allocation2 + $0x10] sm:$0x3] %vm176, 0.0
        %180 = vrot.lane.b32.xlu0 %v171, 1
        %v181 = vpop.permute.xlu0 %180
        %182 = vrot.lane.b32.xlu0 %v172, 1
        %v183 = vpop.permute.xlu0 %182
        %vm186 = vcmask 138248
        %187 = vst.msk [vmem:[#allocation2 + $0x1] sm:$0xff] %vm186, %v181
        %188 = vst.msk [vmem:[#allocation2 + $0x9] sm:$0xff] %vm186, %v183
        %v189 = vld [vmem:[#allocation2] sm:$0xff]
        %v190 = vld [vmem:[#allocation2 + $0x8] sm:$0xff]
        %v191 = vld [vmem:[#allocation2 + $0x1] sm:$0xff]
        %v192 = vld [vmem:[#allocation2 + $0x9] sm:$0xff]
        %v193 = vmax.f32 %v189, %v191
        %v194 = vmax.f32 %v190, %v192
        %v195 = vld [vmem:[#allocation2 + $0x2] sm:$0xff]
        %v196 = vld [vmem:[#allocation2 + $0xa] sm:$0xff]
        %v197 = vmax.f32 %v193, %v195
        %v198 = vmax.f32 %v194, %v196
        %201 = vrot.lane.b32.xlu0 %v197, 127
        %v202 = vpop.permute.xlu0 %201
        %203 = vrot.lane.b32.xlu0 %v198, 127
        %v204 = vpop.permute.xlu0 %203
        %v207 = vmax.f32 %v197, %v202
        %v208 = vmax.f32 %v198, %v204
        %209 = vrot.lane.b32.xlu0 %v197, 126
        %v210 = vpop.permute.xlu0 %209
        %211 = vrot.lane.b32.xlu0 %v198, 126
        %v212 = vpop.permute.xlu0 %211
        %v215 = vmax.f32 %v207, %v210
        %v216 = vmax.f32 %v208, %v212
        %v217 = vsub.f32 1.0, %v215
        %v218 = vsub.f32 1.0, %v216
        %vm219 = vcmask 130048
        %220 = vst.msk [vmem:[%s162] sm:$0xff] %vm219, %v217
        %221 = vst.msk [vmem:[%s162 + $0x8] sm:$0xff] %vm219, %v218
        %s222 = sand.u32 %s75, 1
        %s223 = scalar_lea.sflag [#allocation6], %s222
        %s224 = sand.u32 %s75, 1
        %s225 = smul.addr %s224, 16
        %s226 = scalar_lea.vmem [#allocation7], %s225
        // Predicated region
        $region33: #{tpu_custom_call.1} parent=27 // pred_check
          %p227 = pneg %p85
        $region34: #{tpu_custom_call.1} parent=27 // pred_check_branch
          %229 = sbr.rel (%p227) target = $region36
        $region35: #{tpu_custom_call.1} parent=27 // pred_region
          %s231 = ssub.s32 256, 256
          %232 = vsyncadd %s223, %s231
          %s233 = smul.addr %s20, 2
          %s234 = smul.addr %s233, 128
          %s235 = scalar_lea.hbm %s2, %s234
          %s236 = sshll.u32 %s226, 4
          %s237 = int_to_ptr.vmem [resolvable:$true] %s236
          %242 = dma.vmem_to_hbm [thread:$0]  %s237, 256, %s235, %s223, 128, 128, 8
        $region36: #{tpu_custom_call.1} parent=27 // pred_fallthru
          _
      $region28: #{tpu_custom_call.1} parent=5 // pred_fallthru
        _
      %p243 = scmp.le.s32.totalorder 2, %s15
      // Predicated region
      $region37: #{tpu_custom_call.1} parent=5 // pred_check
        %p244 = pneg %p243
      $region38: #{tpu_custom_call.1} parent=5 // pred_check_branch
        %246 = sbr.rel (%p244) target = $region40
      $region39: #{tpu_custom_call.1} parent=5 // pred_region
        %s247 = ssub.s32 %s15, 2
        // Predicated region
        $region41: #{tpu_custom_call.1} parent=39 // pred_check
          %p248 = pneg %p91
        $region42: #{tpu_custom_call.1} parent=39 // pred_check_branch
          %250 = sbr.rel (%p248) target = $region44
        $region43: #{tpu_custom_call.1} parent=39 // pred_region
          %s251 = sand.u32 %s76, 1
          %s252 = scalar_lea.sflag [#allocation6], %s251
          %s253 = sand.u32 %s76, 1
          %s254 = smul.addr %s253, 16
          %s255 = scalar_lea.vmem [#allocation7], %s254
          %256 = dma.done %s252, 256
        $region44: #{tpu_custom_call.1} parent=39 // pred_fallthru
          _
      $region40: #{tpu_custom_call.1} parent=5 // pred_fallthru
        _
    $region6: #{tpu_custom_call.1} parent=1 // loop_footer
      %s19 = sadd.s32 1, %s15
    $region7: #{tpu_custom_call.1} parent=1 // loop_footer_branch
      %14 = sbr.rel target = $region3
    $region8: #{tpu_custom_call.1} parent=1 // loop_exit
      _
    %257 = vsyncpa [#allocation5], 1
    %s258 = scalar_lea.sflag [#allocation5], 1
    %259 = vsyncpa %s258, 1
    %260 = vsyncpa [#allocation6], 1
    %s261 = scalar_lea.sflag [#allocation6], 1
    %262 = vsyncpa %s261, 1

</llo_original>
